<compile_context>
chip_gen: v7x
topology: tpu7x:2x2x1
jax: 0.10.0
libtpu: 0.0.40
codegen_flags: <defaults>
</compile_context>

<pallas_src>
import jax
import jax.numpy as jnp
from jax.experimental import pallas as pl
from jax.experimental.pallas import tpu as pltpu


def _temporal_attention_kernel(x_ref, w_att_ref, w_out_ref, b_out_ref, o_ref):
    # x_ref:     (Bb, T, D)  input tile, native dtype (no full-block f32 copy)
    # w_att_ref: (1, D)      attention weight row, x.dtype (VPU broadcast path)
    # w_out_ref: (D, Op)     output projection weight (bf16 by default), Op % 128 == 0
    # b_out_ref: (1, Op)     output bias, f32
    # o_ref:     (Bb, Op)    lane-dense unmasked block store
    x = x_ref[...]                                                    # (Bb, T, D)

    # Attention scores: VPU broadcast-multiply + lane reduce, f32 accumulation.
    # b_att is omitted: softmax over T is invariant to a constant shift.
    scores = jnp.sum(x * w_att_ref[...], axis=-1, keepdims=True,
                     dtype=jnp.float32)                               # (Bb, T, 1)

    # Softmax over the time axis (axis=1), max-subtracted for stability.
    m = jnp.max(scores, axis=1, keepdims=True)                        # (Bb, 1, 1)
    e = jnp.exp(scores - m)                                           # (Bb, T, 1)
    denom = jnp.sum(e, axis=1, keepdims=True)                         # (Bb, 1, 1)
    w = e * pl.reciprocal(denom, approx=True)                         # (Bb, T, 1), EUP slot

    # Weighted sum over time: multiply in x's dtype, accumulate in f32.
    x_weighted = jnp.sum(x * w.astype(x.dtype), axis=1,
                         dtype=jnp.float32)                           # (Bb, D)

    # Output projection: real MXU matmul (bf16 operands, f32 accumulation).
    out = jnp.dot(x_weighted.astype(w_out_ref.dtype), w_out_ref[...],
                  preferred_element_type=jnp.float32) + b_out_ref[...]
    o_ref[...] = out.astype(o_ref.dtype)                              # (Bb, Op)


def prepare_temporal_attention_params(w_att, w_out, b_out, *, x_dtype,
                                      proj_dtype=jnp.bfloat16):
    """One-time parameter prep (layout plumbing); cache the result across calls."""
    D = w_att.shape[-1]
    O = w_out.shape[0]
    O_pad = O if O % 128 == 0 else ((O + 127) // 128) * 128           # lane-dense output
    w_att_row = w_att.reshape(1, D).astype(x_dtype)                   # (1, D)
    w_out_t = jnp.transpose(w_out).astype(proj_dtype)                 # (D, O)
    b_out_row = b_out.reshape(1, O).astype(jnp.float32)               # (1, O)
    if O_pad != O:
        w_out_t = jnp.zeros((D, O_pad), proj_dtype).at[:, :O].set(w_out_t)
        b_out_row = jnp.zeros((1, O_pad), jnp.float32).at[:, :O].set(b_out_row)
    return w_att_row, w_out_t, b_out_row, O, O_pad


def temporal_attention(x, w_att, b_att, w_out, b_out, *, block_b=None,
                       x_block_bytes=8 << 20, proj_dtype=jnp.bfloat16):
    """x: (B, T, D); w_att: (1, D); b_att: (1,); w_out: (O, D); b_out: (O,)."""
    # softmax(dim=1) is shift-invariant, so the scalar attention bias never
    # changes the output; it is intentionally not shipped to the kernel.
    del b_att
    B, T, D = x.shape
    w_att_row, w_out_t, b_out_row, O, O_pad = prepare_temporal_attention_params(
        w_att, w_out, b_out, x_dtype=x.dtype, proj_dtype=proj_dtype)

    x_itemsize = jnp.dtype(x.dtype).itemsize
    out_itemsize = x_itemsize
    proj_itemsize = jnp.dtype(proj_dtype).itemsize

    # --- Batch-tile sizing: pure byte budget (no fixed row cap). ------------
    if block_b is None:
        row_bytes = max(1, T * D * x_itemsize)
        rows = max(8, (x_block_bytes // row_bytes) // 8 * 8)
        # Keep >= ~4 grid steps when the batch is big enough so the "parallel"
        # axis can shard across v7x's two TensorCores and DMA overlaps compute.
        if B >= 32:
            rows = min(rows, max(8, ((pl.cdiv(B, 4) + 7) // 8) * 8))
        block_b = B if (B < 8 or B <= rows) else rows
    Bb = min(block_b, B)
    grid_b = pl.cdiv(B, Bb)

    # --- VMEM accounting: all double-buffered blocks + f32 intermediates. ---
    double_buffered = 2 * (Bb * T * D * x_itemsize        # x tile
                           + Bb * O_pad * out_itemsize    # output tile
                           + D * x_itemsize               # attention weight row
                           + D * O_pad * proj_itemsize    # projection weight
                           + O_pad * 4)                   # projection bias
    intermediates = (Bb * T * 4 * 3                       # scores / e / w (f32)
                     + Bb * D * 4                         # x_weighted (f32)
                     + Bb * O_pad * 4)                    # matmul accumulator (f32)
    vmem_limit = int(min(96 << 20,
                         max(32 << 20, (double_buffered + intermediates) * 3 // 2)))

    out = pl.pallas_call(
        _temporal_attention_kernel,
        out_shape=jax.ShapeDtypeStruct((B, O_pad), x.dtype),
        grid_spec=pltpu.PrefetchScalarGridSpec(
            num_scalar_prefetch=0,
            grid=(grid_b,),
            in_specs=[
                pl.BlockSpec((Bb, T, D), lambda b: (b, 0, 0)),     # batch tile of x
                pl.BlockSpec((1, D), lambda b: (0, 0)),            # attention weight (resident)
                pl.BlockSpec((D, O_pad), lambda b: (0, 0)),        # projection weight (resident)
                pl.BlockSpec((1, O_pad), lambda b: (0, 0)),        # projection bias (resident)
            ],
            out_specs=pl.BlockSpec((Bb, O_pad), lambda b: (b, 0)),
        ),
        compiler_params=pltpu.CompilerParams(
            dimension_semantics=("parallel",),                     # megacore-shardable
            vmem_limit_bytes=vmem_limit),
    )(x, w_att_row, w_out_t, b_out_row)

    return out if O_pad == O else out[:, :O]


def temporal_attention_ref(x, w_att, b_att, w_out, b_out):
    """Plain-JAX reference mirroring the PyTorch forward."""
    scores = jnp.einsum("btd,od->bto", x, w_att) + b_att               # (B, T, 1)
    weights = jax.nn.softmax(scores, axis=1)
    x_weighted = jnp.sum(x * weights, axis=1)                          # (B, D)
    return jnp.einsum("bd,od->bo", x_weighted, w_out) + b_out          # (B, O)


if __name__ == "__main__":
    T, D, O = 8, 32, 16   # seq, input_dim, output_dim

    key = jax.random.PRNGKey(0)
    kx, kw1, kb1, kw2, kb2 = jax.random.split(key, 5)

    # Deterministic synthetic parameters (PyTorch Linear weight layout: (out, in)).
    bound = 1.0 / (D ** 0.5)
    w_att = jax.random.uniform(kw1, (1, D), minval=-bound, maxval=bound, dtype=jnp.float32)
    b_att = jax.random.uniform(kb1, (1,), minval=-bound, maxval=bound, dtype=jnp.float32)
    w_out = jax.random.uniform(kw2, (O, D), minval=-bound, maxval=bound, dtype=jnp.float32)
    b_out = jax.random.uniform(kb2, (O,), minval=-bound, maxval=bound, dtype=jnp.float32)

    # --- Check 1: small batch, default bf16 projection weights. -------------
    B = 2
    x = jax.random.normal(kx, (B, T, D), dtype=jnp.float32)
    out = jax.block_until_ready(temporal_attention(x, w_att, b_att, w_out, b_out))
    ref = temporal_attention_ref(x, w_att, b_att, w_out, b_out)
    assert out.shape == (B, O)
    # Tolerance covers bf16 projection weights + EUP approximate reciprocal.
    assert jnp.allclose(out, ref, atol=2e-2, rtol=2e-2), "mismatch vs reference (bf16 proj)"

    # --- Check 2: f32 projection path — tight parity with the reference. ----
    out_f32 = jax.block_until_ready(
        temporal_attention(x, w_att, b_att, w_out, b_out, proj_dtype=jnp.float32))
    assert jnp.allclose(out_f32, ref, atol=2e-3, rtol=2e-3), "mismatch vs reference (f32 proj)"

    # --- Check 3: multi-step grid with a partial last batch tile. -----------
    B2 = 66
    x2 = jax.random.normal(kx, (B2, T, D), dtype=jnp.float32)
    out2 = jax.block_until_ready(temporal_attention(x2, w_att, b_att, w_out, b_out))
    ref2 = temporal_attention_ref(x2, w_att, b_att, w_out, b_out)
    assert out2.shape == (B2, O)
    assert jnp.allclose(out2, ref2, atol=2e-2, rtol=2e-2), "mismatch vs reference (tiled batch)"

    print("KERNEL_OK")
</pallas_src>

<mosaic_0001>
module attributes {stable_mosaic.version = 11 : i64} {
  func.func @_temporal_attention_kernel(%arg0: i32, %arg1: memref<2x8x32xf32, #tpu.memory_space<vmem>>, %arg2: memref<1x32xf32, #tpu.memory_space<vmem>>, %arg3: memref<32x128xbf16, #tpu.memory_space<vmem>>, %arg4: memref<1x128xf32, #tpu.memory_space<vmem>>, %arg5: memref<2x128xf32, #tpu.memory_space<vmem>>) attributes {dimension_semantics = [#tpu.dimension_semantics<parallel>], iteration_bounds = array<i64: 1>, scalar_prefetch = 0 : i64, scratch_operands = 0 : i64, tpu.core_type = #tpu.core_type<tc>, window_params = [{transform_indices = @transform_0, window_bounds = array<i64: 2, 8, 32>}, {pipeline_mode = #tpu.pipeline_mode<synchronous>, transform_indices = @transform_1, window_bounds = array<i64: 1, 32>}, {pipeline_mode = #tpu.pipeline_mode<synchronous>, transform_indices = @transform_2, window_bounds = array<i64: 32, 128>}, {pipeline_mode = #tpu.pipeline_mode<synchronous>, transform_indices = @transform_3, window_bounds = array<i64: 1, 128>}, {transform_indices = @transform_4, window_bounds = array<i64: 2, 128>}]} {
    %c0 = arith.constant 0 : index
    %c0_0 = arith.constant 0 : index
    %c0_1 = arith.constant 0 : index
    %0 = vector.load %arg1[%c0, %c0_0, %c0_1] : memref<2x8x32xf32, #tpu.memory_space<vmem>>, vector<2x8x32xf32>
    %c0_2 = arith.constant 0 : index
    %c0_3 = arith.constant 0 : index
    %1 = vector.load %arg2[%c0_2, %c0_3] : memref<1x32xf32, #tpu.memory_space<vmem>>, vector<1x32xf32>
    %2 = vector.shape_cast %1 : vector<1x32xf32> to vector<1x1x32xf32>
    %3 = vector.broadcast %2 : vector<1x1x32xf32> to vector<2x8x32xf32>
    %4 = arith.mulf %0, %3 : vector<2x8x32xf32>
    %cst = arith.constant dense<0.000000e+00> : vector<2x8xf32>
    %5 = vector.multi_reduction <add>, %4, %cst [2] : vector<2x8x32xf32> to vector<2x8xf32>
    %6 = vector.shape_cast %5 : vector<2x8xf32> to vector<2x8x1xf32>
    %cst_4 = arith.constant dense<0xFF800000> : vector<2x1xf32>
    %7 = vector.multi_reduction <maximumf>, %6, %cst_4 [1] : vector<2x8x1xf32> to vector<2x1xf32>
    %8 = vector.shape_cast %7 : vector<2x1xf32> to vector<2x1x1xf32>
    %9 = vector.broadcast %8 : vector<2x1x1xf32> to vector<2x8x1xf32>
    %10 = arith.subf %6, %9 : vector<2x8x1xf32>
    %11 = math.exp %10 : vector<2x8x1xf32>
    %cst_5 = arith.constant dense<0.000000e+00> : vector<2x1xf32>
    %12 = vector.multi_reduction <add>, %11, %cst_5 [1] : vector<2x8x1xf32> to vector<2x1xf32>
    %13 = vector.shape_cast %12 : vector<2x1xf32> to vector<2x1x1xf32>
    %14 = tpu.reciprocal %13 {approx = true} : vector<2x1x1xf32> -> vector<2x1x1xf32>
    %15 = vector.broadcast %14 : vector<2x1x1xf32> to vector<2x8x1xf32>
    %16 = arith.mulf %11, %15 : vector<2x8x1xf32>
    %17 = vector.broadcast %16 : vector<2x8x1xf32> to vector<2x8x32xf32>
    %18 = arith.mulf %0, %17 : vector<2x8x32xf32>
    %cst_6 = arith.constant dense<0.000000e+00> : vector<2x32xf32>
    %19 = vector.multi_reduction <add>, %18, %cst_6 [1] : vector<2x8x32xf32> to vector<2x32xf32>
    %20 = arith.truncf %19 : vector<2x32xf32> to vector<2x32xbf16>
    %c0_7 = arith.constant 0 : index
    %c0_8 = arith.constant 0 : index
    %21 = vector.load %arg3[%c0_7, %c0_8] : memref<32x128xbf16, #tpu.memory_space<vmem>>, vector<32x128xbf16>
    %cst_9 = arith.constant dense<0.000000e+00> : vector<2x128xf32>
    %22 = tpu.matmul %20, %21, %cst_9 {dimension_numbers = #tpu.dot_dimension_numbers<[1], [0], [0], [1], [0, 0, 1, 1], [], []>} : vector<2x32xbf16>, vector<32x128xbf16>, vector<2x128xf32> -> vector<2x128xf32>
    %c0_10 = arith.constant 0 : index
    %c0_11 = arith.constant 0 : index
    %23 = vector.load %arg4[%c0_10, %c0_11] : memref<1x128xf32, #tpu.memory_space<vmem>>, vector<1x128xf32>
    %24 = vector.broadcast %23 : vector<1x128xf32> to vector<2x128xf32>
    %25 = arith.addf %22, %24 : vector<2x128xf32>
    %c0_12 = arith.constant 0 : index
    %c0_13 = arith.constant 0 : index
    %26 = vector.load %arg5[%c0_12, %c0_13] : memref<2x128xf32, #tpu.memory_space<vmem>>, vector<2x128xf32>
    tpu.vector_store %arg5[%c0_12, %c0_13], %25 {strides = array<i32>} : memref<2x128xf32, #tpu.memory_space<vmem>>, vector<2x128xf32>,
    return
  }
  func.func @transform_0(%arg0: i32) -> (i32, i32, i32) {
    %c0_i32 = arith.constant 0 : i32
    %c0_i32_0 = arith.constant 0 : i32
    %c0_i32_1 = arith.constant 0 : i32
    return %arg0, %c0_i32, %c0_i32_0 : i32, i32, i32
  }
  func.func @transform_1(%arg0: i32) -> (i32, i32) {
    %c0_i32 = arith.constant 0 : i32
    %c0_i32_0 = arith.constant 0 : i32
    %c0_i32_1 = arith.constant 0 : i32
    return %c0_i32, %c0_i32_0 : i32, i32
  }
  func.func @transform_2(%arg0: i32) -> (i32, i32) {
    %c0_i32 = arith.constant 0 : i32
    %c0_i32_0 = arith.constant 0 : i32
    %c0_i32_1 = arith.constant 0 : i32
    return %c0_i32, %c0_i32_0 : i32, i32
  }
  func.func @transform_3(%arg0: i32) -> (i32, i32) {
    %c0_i32 = arith.constant 0 : i32
    %c0_i32_0 = arith.constant 0 : i32
    %c0_i32_1 = arith.constant 0 : i32
    return %c0_i32, %c0_i32_0 : i32, i32
  }
  func.func @transform_4(%arg0: i32) -> (i32, i32) {
    %c0_i32 = arith.constant 0 : i32
    %c0_i32_0 = arith.constant 0 : i32
    return %arg0, %c0_i32 : i32, i32
  }
}

</mosaic_0001>

<llo_original>
// kernel: tpu_custom_call.1
$region0: #{tpu_custom_call.1}
  #allocation0 [shape = 'u32[]', space=smem, size = 0x4, offset = 0x4, fixed_abs, tag = 'smem constant byte address 0x4 - core index']
  #allocation1 [shape = 'u32[144,128]{1,0:T(1,128)}', space=vmem, size = 0x12000, scoped, tag = 'internal scratch']
  %s0 = inlined_call_operand.hbm [shape: f32[2,8,32], index: 0, kind: input, shape index: {}]
  %s1 = inlined_call_operand.vmem [shape: f32[1,32], index: 1, kind: input, shape index: {}]
  %s2 = inlined_call_operand.hbm [shape: bf16[32,128], index: 2, kind: input, shape index: {}]
  %s3 = inlined_call_operand.vmem [shape: f32[1,128], index: 3, kind: input, shape index: {}]
  %s4 = inlined_call_operand.hbm [shape: f32[2,128], index: 4, kind: output, shape index: {}]
  %s5 = sld [smem:[#allocation0]]
  $region34: #{tpu_custom_call.1} parent=0
    _
  %s7 = ssub.s32 1, %s5
  %s8 = scalar_select 0, %s7, %s5
  $region1: #{tpu_custom_call.1} parent=0
    #allocation2 [shape = 'u8[8192]{0}', space=vmem, size = 0x2000, scoped, tag = 'input window, operand 0, single buffered']
    #allocation3 [shape = 's32[1]{0}', space=sflag, size = 0x4, scoped, tag = 'scoped memory for tpu_custom_call.1']
    #allocation4 [shape = 's32[1]{0}', space=sflag, size = 0x4, scoped, tag = 'scoped memory for tpu_custom_call.1']
    #allocation5 [shape = 'u8[8192]{0}', space=vmem, size = 0x2000, scoped, tag = 'input window, operand 2, single buffered']
    #allocation6 [shape = 's32[1]{0}', space=sflag, size = 0x4, scoped, tag = 'scoped memory for tpu_custom_call.1']
    #allocation7 [shape = 'u8[1024]{0}', space=vmem, size = 0x400, scoped, tag = 'output window, operand 0, single buffered']
    %9 = vsyncpa [#allocation3], 0
    %10 = vsyncpa [#allocation6], 0
    %11 = vsyncpa [#allocation4], 0
    // Predicated region
    $region2: #{tpu_custom_call.1} parent=1 // pred_check
      _
    $region3: #{tpu_custom_call.1} parent=1 // pred_check_branch
      %13 = sbr.rel (0) target = $region5
    $region4: #{tpu_custom_call.1} parent=1 // pred_region
      %s15 = ssub.s32 256, 256
      %16 = vsyncadd [#allocation3], %s15
      %s17 = sshll.u32 [#allocation2], 4
      %s18 = int_to_ptr.vmem [resolvable:$true] %s17
      %23 = dma.hbm_to_vmem [thread:$0]  %s0, 256, %s18, [#allocation3], 128, 128, 8
    $region5: #{tpu_custom_call.1} parent=1 // pred_fallthru
      _
    // Predicated region
    $region6: #{tpu_custom_call.1} parent=1 // pred_check
      _
    $region7: #{tpu_custom_call.1} parent=1 // pred_check_branch
      %25 = sbr.rel (0) target = $region9
    $region8: #{tpu_custom_call.1} parent=1 // pred_region
      _
    $region9: #{tpu_custom_call.1} parent=1 // pred_fallthru
      _
    // Predicated region
    $region10: #{tpu_custom_call.1} parent=1 // pred_check
      _
    $region11: #{tpu_custom_call.1} parent=1 // pred_check_branch
      %27 = sbr.rel (0) target = $region13
    $region12: #{tpu_custom_call.1} parent=1 // pred_region
      %s29 = ssub.s32 256, 256
      %30 = vsyncadd [#allocation6], %s29
      %s31 = sshll.u32 [#allocation5], 4
      %s32 = int_to_ptr.vmem [resolvable:$true] %s31
      %37 = dma.hbm_to_vmem [thread:$0]  %s2, 256, %s32, [#allocation6], 64, 64, 4
    $region13: #{tpu_custom_call.1} parent=1 // pred_fallthru
      _
    // Predicated region
    $region14: #{tpu_custom_call.1} parent=1 // pred_check
      _
    $region15: #{tpu_custom_call.1} parent=1 // pred_check_branch
      %39 = sbr.rel (0) target = $region17
    $region16: #{tpu_custom_call.1} parent=1 // pred_region
      _
    $region17: #{tpu_custom_call.1} parent=1 // pred_fallthru
      _
    // Predicated region
    $region18: #{tpu_custom_call.1} parent=1 // pred_check
      _
    $region19: #{tpu_custom_call.1} parent=1 // pred_check_branch
      %41 = sbr.rel (0) target = $region21
    $region20: #{tpu_custom_call.1} parent=1 // pred_region
      %42 = dma.done [#allocation3], 256
    $region21: #{tpu_custom_call.1} parent=1 // pred_fallthru
      _
    // Predicated region
    $region22: #{tpu_custom_call.1} parent=1 // pred_check
      _
    $region23: #{tpu_custom_call.1} parent=1 // pred_check_branch
      %44 = sbr.rel (0) target = $region25
    $region24: #{tpu_custom_call.1} parent=1 // pred_region
      %45 = dma.done [#allocation6], 256
    $region25: #{tpu_custom_call.1} parent=1 // pred_fallthru
      _
    %v47 = vld [vmem:[#allocation2] sm:$0xff]
    %v48 = vld [vmem:[#allocation2 + $0x8] sm:$0xff]
    %v49 = vld [vmem:[%s1] sm:$0x1]
    %v51 = vlaneseq
    %v52 = vshrl.u32 %v51, 7
    %v53 = vsub.s32 0, %v52
    %v54 = vrot.slane %v49, %v53
    %v56 = vmul.f32 %v47, %v54
    %v57 = vmul.f32 %v48, %v54
    %vm58 = vcmask 261120
    %v59 = vsel %vm58, %v56, 0.0
    %60 = vadd.xlane.f32.xlu0 %v59
    %v61 = vpop.xlane.xlu0 %60
    %v62 = vsel %vm58, %v57, 0.0
    %63 = vadd.xlane.f32.xlu0 %v62
    %v64 = vpop.xlane.xlu0 %63
    %v65 = vrot.slane %v61, 4
    %v66 = vmax.f32 %v61, %v65
    %v67 = vrot.slane %v66, 2
    %v68 = vmax.f32 %v66, %v67
    %v69 = vrot.slane %v68, 1
    %v70 = vmax.f32 %v68, %v69
    %v71 = vrot.slane %v64, 4
    %v72 = vmax.f32 %v64, %v71
    %v73 = vrot.slane %v72, 2
    %v74 = vmax.f32 %v72, %v73
    %v75 = vrot.slane %v74, 1
    %v76 = vmax.f32 %v74, %v75
    %v77 = vsub.f32 %v61, %v70
    %v78 = vsub.f32 %v64, %v76
    %v79 = vmul.f32 %v77, 1.442695
    %v80 = vpow.pop %v79
    %v81 = vmul.f32 %v78, 1.442695
    %v82 = vpow.pop %v81
    %v83 = vrot.slane %v80, 4
    %v84 = vadd.f32 %v80, %v83
    %v85 = vrot.slane %v84, 2
    %v86 = vadd.f32 %v84, %v85
    %v87 = vrot.slane %v86, 1
    %v88 = vadd.f32 %v86, %v87
    %v89 = vrot.slane %v82, 4
    %v90 = vadd.f32 %v82, %v89
    %v91 = vrot.slane %v90, 2
    %v92 = vadd.f32 %v90, %v91
    %v93 = vrot.slane %v92, 1
    %v94 = vadd.f32 %v92, %v93
    %v95 = vrcp.pop %v88
    %v96 = vrcp.pop %v94
    %v97 = vmul.f32 %v80, %v95
    %v98 = vmul.f32 %v82, %v96
    %v99 = vmul.f32 %v47, %v97
    %v100 = vmul.f32 %v48, %v98
    %v101 = vsel %vm58, %v99, 0.0
    %v102 = vrot.slane %v101, 4
    %v103 = vadd.f32 %v101, %v102
    %v104 = vrot.slane %v103, 2
    %v105 = vadd.f32 %v103, %v104
    %v106 = vrot.slane %v105, 1
    %v107 = vadd.f32 %v105, %v106
    %v108 = vsel %vm58, %v100, 0.0
    %v109 = vrot.slane %v108, 4
    %v110 = vadd.f32 %v108, %v109
    %v111 = vrot.slane %v110, 2
    %v112 = vadd.f32 %v110, %v111
    %v113 = vrot.slane %v112, 1
    %v114 = vadd.f32 %v112, %v113
    %v115 = vpack.c.bf16 %v107, %v107
    %v116 = vpack.c.bf16 %v114, %v114
    %v117 = vld [vmem:[#allocation5] sm:$0xf]
    %v118 = vld [vmem:[#allocation5 + $0x4] sm:$0xf]
    %v119 = vld [vmem:[#allocation5 + $0x8] sm:$0xf]
    %v120 = vld [vmem:[#allocation5 + $0xc] sm:$0xf]
    %v121 = vld [vmem:[%s3] sm:$0x1]
    %v123 = vlaneseq
    %v124 = vshrl.u32 %v123, 7
    %v125 = vsub.s32 0, %v124
    %v126 = vrot.slane %v121, %v125
    %v130 = vunpack.c.l.b16 %v115
    %v131 = vunpack.c.l.b16 %v116
    %vm132 = vcmask 1041409
    %v133 = vsel %vm132, %v131, %v130
    %v134 = vpack.c.b16 %v133, %v133
    %v139 = vunpack.c.l.b16 %v117
    %v140 = vunpack.c.l.b16 %v118
    %v141 = vunpack.c.l.b16 %v119
    %v142 = vunpack.c.l.b16 %v120
    %v143 = vpack.c.b16 %v140, %v139
    %v144 = vpack.c.b16 %v142, %v141
    %v148 = vsel %vm58, %v134, 0
    %150 = vmatprep.subr.bf16.mxu0 0
    %151 = vmatpush1.bf16.msra.mxu0 %v143
    %152 = vmatprep.subr.bf16.mxu0 0
    %153 = vmatpush1.bf16.msra.mxu0 %v144
    %154 = vmatprep.subr.bf16.mxu0 0
    %155 = vmatpush1.bf16.msra.mxu0 0
    %156 = vmatprep.subr.bf16.mxu0 0
    %157 = vmatpush1.bf16.msra.mxu0 0
    %158 = vmatprep.subr.bf16.mxu0 0
    %159 = vmatpush1.bf16.msra.mxu0 0
    %160 = vmatprep.subr.bf16.mxu0 0
    %161 = vmatpush1.bf16.msra.mxu0 0
    %162 = vmatprep.subr.bf16.mxu0 0
    %163 = vmatpush1.bf16.msra.mxu0 0
    %164 = vmatprep.subr.bf16.mxu0 0
    %165 = vmatpush1.bf16.msra.mxu0 0
    %166 = vmatprep.subr.bf16.mxu0 0
    %167 = vmatpush1.bf16.msra.mxu0 0
    %168 = vmatprep.subr.bf16.mxu0 0
    %169 = vmatpush1.bf16.msra.mxu0 0
    %170 = vmatprep.subr.bf16.mxu0 0
    %171 = vmatpush1.bf16.msra.mxu0 0
    %172 = vmatprep.subr.bf16.mxu0 0
    %173 = vmatpush1.bf16.msra.mxu0 0
    %174 = vmatprep.subr.bf16.mxu0 0
    %175 = vmatpush1.bf16.msra.mxu0 0
    %176 = vmatprep.subr.bf16.mxu0 0
    %177 = vmatpush1.bf16.msra.mxu0 0
    %178 = vmatprep.subr.bf16.mxu0 0
    %179 = vmatpush1.bf16.msra.mxu0 0
    %180 = vmatprep.subr.bf16.mxu0 0
    %181 = vmatpush1.bf16.msra.mxu0 0
    %182 = vmatprep.mubr.bf16.mxu0 0
    %183 = vmatmul.mubr.bf16.gmra.mrb[0].mxu0 %v148
    %v184 = vpop.f32.mrb[0].mxu0
    %v185 = vadd.f32 %v126, %v184
    %v186 = vpop.f32.mrb[0].mxu0
    %v187 = vpop.f32.mrb[0].mxu0
    %v188 = vpop.f32.mrb[0].mxu0
    %189 = vdwg.mxu0
    %190 = vst [vmem:[#allocation7] sm:$0x3] %v185
    // Predicated region
    $region26: #{tpu_custom_call.1} parent=1 // pred_check
      _
    $region27: #{tpu_custom_call.1} parent=1 // pred_check_branch
      %192 = sbr.rel (0) target = $region29
    $region28: #{tpu_custom_call.1} parent=1 // pred_region
      %s194 = ssub.s32 32, 32
      %195 = vsyncadd [#allocation4], %s194
      %s197 = sshll.u32 [#allocation7], 4
      %s198 = int_to_ptr.vmem [resolvable:$true] %s197
      %200 = dma.vmem_to_hbm [thread:$0]  %s198, 32, %s4, [#allocation4]
    $region29: #{tpu_custom_call.1} parent=1 // pred_fallthru
      _
    // Predicated region
    $region30: #{tpu_custom_call.1} parent=1 // pred_check
      _
    $region31: #{tpu_custom_call.1} parent=1 // pred_check_branch
      %202 = sbr.rel (0) target = $region33
    $region32: #{tpu_custom_call.1} parent=1 // pred_region
      %203 = dma.done [#allocation4], 32
    $region33: #{tpu_custom_call.1} parent=1 // pred_fallthru
      _
    %204 = vsyncpa [#allocation3], 1
    %205 = vsyncpa [#allocation6], 1
    %206 = vsyncpa [#allocation4], 1

</llo_original>
